<compile_context>
chip_gen: v5e
topology: v5e:2x2
jax: 0.10.0
libtpu: 0.0.40
codegen_flags: <defaults>
</compile_context>

<pallas_src>
import jax
import jax.numpy as jnp
from jax.experimental import pallas as pl
from jax.experimental.pallas import tpu as pltpu

_MIB = 1024 * 1024


def basic_nn_kernel(params_ref, x_ref, o_ref):
    # params layout: [w00, b00, w01, w10, b10, w11, final_bias]
    w00 = params_ref[0]
    b00 = params_ref[1]
    w01 = params_ref[2]
    w10 = params_ref[3]
    b10 = params_ref[4]
    w11 = params_ref[5]
    final_bias = params_ref[6]

    x = x_ref[...]
    top = jnp.maximum(w00 * x + b00, 0.0)
    bot = jnp.maximum(w10 * x + b10, 0.0)
    s = w01 * top + w11 * bot + final_bias
    o_ref[...] = jnp.maximum(s, 0.0)


def _vmem_tile_budget_bytes():
    """Per-generation budget for the live tile working set (4 buffers)."""
    try:
        cap = pltpu.get_tpu_info().vmem_capacity_bytes
    except Exception:
        cap = 64 * _MIB  # conservative (v7x per-TC VMEM)
    # Keep at least half of physical VMEM free for compiler scratch:
    #   128 MiB (v5e/v6e) -> 48 MiB ;  64 MiB (v7x) -> 32 MiB
    return min(48 * _MIB, cap // 2)


def _choose_tiles(rows, cols, dtype, budget_bytes, min_steps=4):
    """Pick (tile_rows, tile_cols) respecting the (8,128) rule + VMEM budget."""
    bpe = jnp.dtype(dtype).itemsize
    # 4 live tile buffers: double-buffered input + double-buffered output.
    max_tile_bytes = max(budget_bytes // 4, 8 * 128 * bpe)

    # Column tile: keep full width (lane-dense, unmasked stores) unless even an
    # 8-row slab of full width would exceed the budget; then tile columns in
    # large multiples of 128.
    tile_cols = cols
    if 8 * cols * bpe > max_tile_bytes:
        tile_cols = (max_tile_bytes // (8 * bpe)) // 128 * 128
        tile_cols = int(max(128, min(tile_cols, cols)))

    # Row tile: largest multiple of 8 that fits the budget (or the full dim).
    max_rows = (max_tile_bytes // (tile_cols * bpe)) // 8 * 8
    tile_rows = int(min(rows, max(8, max_rows)))

    # Ensure >= min_steps grid steps when the array is large enough so the
    # grid can shard across v7x's 2 TensorCores and DMA overlaps compute.
    col_steps = pl.cdiv(cols, tile_cols)
    row_steps = pl.cdiv(rows, tile_rows)
    if row_steps * col_steps < min_steps and rows >= 8 * min_steps:
        want_row_steps = pl.cdiv(min_steps, col_steps)
        tr = pl.cdiv(rows, want_row_steps)
        tr = ((tr + 7) // 8) * 8  # keep sublane (8) divisibility
        tile_rows = int(min(tile_rows, tr))

    return tile_rows, tile_cols


def basic_nn_forward(x, params, tile_rows=None, tile_cols=None):
    """Elementwise forward. x: f32[...]; params: f32[7]."""
    orig_shape = x.shape
    if x.ndim == 1:
        x2 = x.reshape(1, -1)
    elif x.ndim == 2:
        x2 = x
    else:
        x2 = x.reshape(-1, x.shape[-1])
    rows, cols = x2.shape

    budget = _vmem_tile_budget_bytes()
    auto_tr, auto_tc = _choose_tiles(rows, cols, x2.dtype, budget)
    if tile_rows is None:
        tile_rows = auto_tr
    if tile_cols is None:
        tile_cols = auto_tc
    tile_rows = int(min(tile_rows, rows))
    tile_cols = int(min(tile_cols, cols))

    grid = (pl.cdiv(rows, tile_rows), pl.cdiv(cols, tile_cols))

    bpe = jnp.dtype(x2.dtype).itemsize
    tile_bytes = tile_rows * tile_cols * bpe
    # 2x input + 2x output tile buffers, plus slack for compiler scratch.
    vmem_limit = max(4 * tile_bytes + 4 * _MIB, 16 * _MIB)

    n_elems = rows * cols
    cost = pl.CostEstimate(
        flops=11 * n_elems,                  # 2 affine + relu per branch, combine, final relu
        transcendentals=0,
        bytes_accessed=2 * n_elems * bpe,    # stream in + stream out
    )

    out = pl.pallas_call(
        basic_nn_kernel,
        out_shape=jax.ShapeDtypeStruct(x2.shape, x2.dtype),
        grid=grid,
        in_specs=[
            pl.BlockSpec(memory_space=pltpu.SMEM),              # 7 scalar params
            pl.BlockSpec((tile_rows, tile_cols), lambda i, j: (i, j),
                         memory_space=pltpu.VMEM),
        ],
        out_specs=pl.BlockSpec((tile_rows, tile_cols), lambda i, j: (i, j),
                               memory_space=pltpu.VMEM),
        compiler_params=pltpu.CompilerParams(
            dimension_semantics=("parallel", "parallel"),
            vmem_limit_bytes=int(vmem_limit),
        ),
        cost_estimate=cost,
    )(params, x2)

    return out.reshape(orig_shape)


def basic_nn_reference(x, params):
    w00, b00, w01, w10, b10, w11, final_bias = [params[i] for i in range(7)]
    top = w01 * jnp.maximum(w00 * x + b00, 0.0)
    bot = w11 * jnp.maximum(w10 * x + b10, 0.0)
    return jnp.maximum(top + bot + final_bias, 0.0)


if __name__ == "__main__":
    # Deterministic parameter values from the module's __init__:
    # [w00, b00, w01, w10, b10, w11, final_bias]
    params = jnp.array(
        [1.7, -0.85, -40.8, 12.6, 0.0, 2.7, 0.0], dtype=jnp.float32
    )

    # Small deterministic input in [0, 1] (the "dose" domain of this toy net).
    key = jax.random.PRNGKey(0)
    x = jax.random.uniform(key, (256, 512), dtype=jnp.float32)

    # Auto-tiled path (multi-step grid: exercises pipelining + megacore path).
    out = jax.block_until_ready(basic_nn_forward(x, params))
    ref = basic_nn_reference(x, params)
    assert out.shape == x.shape and out.dtype == x.dtype
    assert jnp.allclose(out, ref, atol=1e-5, rtol=1e-5)

    # Single-block path on a tiny tile.
    x2 = jax.random.uniform(jax.random.PRNGKey(1), (8, 128), dtype=jnp.float32)
    out2 = jax.block_until_ready(basic_nn_forward(x2, params))
    assert jnp.allclose(out2, basic_nn_reference(x2, params), atol=1e-5, rtol=1e-5)

    # 1-D "dose vector" path (reshaped to 2-D internally).
    x3 = jnp.linspace(0.0, 1.0, 1000, dtype=jnp.float32)
    out3 = jax.block_until_ready(basic_nn_forward(x3, params))
    assert out3.shape == x3.shape
    assert jnp.allclose(out3, basic_nn_reference(x3, params), atol=1e-5, rtol=1e-5)

    print("KERNEL_OK")
</pallas_src>

<mosaic_0001>
module attributes {stable_mosaic.version = 11 : i64} {
  func.func @basic_nn_kernel(%arg0: i32, %arg1: i32, %arg2: memref<7xf32, #tpu.memory_space<smem>>, %arg3: memref<64x512xf32, #tpu.memory_space<vmem>>, %arg4: memref<64x512xf32, #tpu.memory_space<vmem>>) attributes {dimension_semantics = [#tpu.dimension_semantics<parallel>, #tpu.dimension_semantics<parallel>], iteration_bounds = array<i64: 4, 1>, scalar_prefetch = 0 : i64, scratch_operands = 0 : i64, tpu.core_type = #tpu.core_type<tc>, window_params = [{transform_indices = @transform_0, window_bounds = array<i64: 7>}, {transform_indices = @transform_1, window_bounds = array<i64: 64, 512>}, {transform_indices = @transform_2, window_bounds = array<i64: 64, 512>}]} {
    %c0 = arith.constant 0 : index
    %0 = memref.load %arg2[%c0] : memref<7xf32, #tpu.memory_space<smem>>
    %c1 = arith.constant 1 : index
    %1 = memref.load %arg2[%c1] : memref<7xf32, #tpu.memory_space<smem>>
    %c2 = arith.constant 2 : index
    %2 = memref.load %arg2[%c2] : memref<7xf32, #tpu.memory_space<smem>>
    %c3 = arith.constant 3 : index
    %3 = memref.load %arg2[%c3] : memref<7xf32, #tpu.memory_space<smem>>
    %c4 = arith.constant 4 : index
    %4 = memref.load %arg2[%c4] : memref<7xf32, #tpu.memory_space<smem>>
    %c5 = arith.constant 5 : index
    %5 = memref.load %arg2[%c5] : memref<7xf32, #tpu.memory_space<smem>>
    %c6 = arith.constant 6 : index
    %6 = memref.load %arg2[%c6] : memref<7xf32, #tpu.memory_space<smem>>
    %c0_0 = arith.constant 0 : index
    %c0_1 = arith.constant 0 : index
    %7 = vector.load %arg3[%c0_0, %c0_1] : memref<64x512xf32, #tpu.memory_space<vmem>>, vector<64x512xf32>
    %8 = vector.broadcast %0 : f32 to vector<64x512xf32>
    %9 = arith.mulf %8, %7 : vector<64x512xf32>
    %10 = vector.broadcast %1 : f32 to vector<64x512xf32>
    %11 = arith.addf %9, %10 : vector<64x512xf32>
    %cst = arith.constant 0.000000e+00 : f32
    %12 = vector.broadcast %cst : f32 to vector<64x512xf32>
    %13 = arith.maximumf %11, %12 : vector<64x512xf32>
    %14 = vector.broadcast %3 : f32 to vector<64x512xf32>
    %15 = arith.mulf %14, %7 : vector<64x512xf32>
    %16 = vector.broadcast %4 : f32 to vector<64x512xf32>
    %17 = arith.addf %15, %16 : vector<64x512xf32>
    %cst_2 = arith.constant 0.000000e+00 : f32
    %18 = vector.broadcast %cst_2 : f32 to vector<64x512xf32>
    %19 = arith.maximumf %17, %18 : vector<64x512xf32>
    %20 = vector.broadcast %2 : f32 to vector<64x512xf32>
    %21 = arith.mulf %20, %13 : vector<64x512xf32>
    %22 = vector.broadcast %5 : f32 to vector<64x512xf32>
    %23 = arith.mulf %22, %19 : vector<64x512xf32>
    %24 = arith.addf %21, %23 : vector<64x512xf32>
    %25 = vector.broadcast %6 : f32 to vector<64x512xf32>
    %26 = arith.addf %24, %25 : vector<64x512xf32>
    %cst_3 = arith.constant 0.000000e+00 : f32
    %27 = vector.broadcast %cst_3 : f32 to vector<64x512xf32>
    %28 = arith.maximumf %26, %27 : vector<64x512xf32>
    %c0_4 = arith.constant 0 : index
    %c0_5 = arith.constant 0 : index
    %29 = vector.load %arg4[%c0_4, %c0_5] : memref<64x512xf32, #tpu.memory_space<vmem>>, vector<64x512xf32>
    tpu.vector_store %arg4[%c0_4, %c0_5], %28 {strides = array<i32>} : memref<64x512xf32, #tpu.memory_space<vmem>>, vector<64x512xf32>,
    return
  }
  func.func @transform_0(%arg0: i32, %arg1: i32) -> i32 {
    %c0_i32 = arith.constant 0 : i32
    %c0_i32_0 = arith.constant 0 : i32
    return %c0_i32 : i32
  }
  func.func @transform_1(%arg0: i32, %arg1: i32) -> (i32, i32) {
    %c0_i32 = arith.constant 0 : i32
    return %arg0, %arg1 : i32, i32
  }
  func.func @transform_2(%arg0: i32, %arg1: i32) -> (i32, i32) {
    %c0_i32 = arith.constant 0 : i32
    return %arg0, %arg1 : i32, i32
  }
}

</mosaic_0001>

<llo_original>
// kernel: tpu_custom_call.1
$region0: #{tpu_custom_call.1}
  #allocation0 [shape = 'u32[]', space=smem, size = 0x4, offset = 0x4, fixed_abs, tag = 'smem constant byte address 0x4 - core index']
  #allocation1 [shape = 'u32[72,128]{1,0:T(1,128)}', space=vmem, size = 0x9000, scoped, tag = 'internal scratch']
  %s0 = inlined_call_operand.hbm [shape: f32[7], index: 0, kind: input, shape index: {}]
  %s1 = inlined_call_operand.hbm [shape: f32[256,512], index: 1, kind: input, shape index: {}]
  %s2 = inlined_call_operand.hbm [shape: f32[256,512], index: 2, kind: output, shape index: {}]
  %s3 = sld [smem:[#allocation0]]
  $region49: #{tpu_custom_call.1} parent=0
    _
  %s5 = ssub.s32 1, %s3
  %s6 = scalar_select 0, %s5, %s3
  $region1: #{tpu_custom_call.1} parent=0
    #allocation2 [shape = 'u8[512]{0}', space=smem, size = 0x200, scoped, tag = 'input window, operand 0, single buffered']
    #allocation3 [shape = 's32[2]{0}', space=sflag, size = 0x8, scoped, tag = 'scoped memory for tpu_custom_call.1']
    #allocation4 [shape = 's32[2]{0}', space=sflag, size = 0x8, scoped, tag = 'scoped memory for tpu_custom_call.1']
    #allocation5 [shape = 's32[2]{0}', space=sflag, size = 0x8, scoped, tag = 'scoped memory for tpu_custom_call.1']
    #allocation6 [shape = 'u8[262144]{0}', space=vmem, size = 0x40000, scoped, tag = 'input window, operand 1']
    #allocation7 [shape = 'u8[262144]{0}', space=vmem, size = 0x40000, scoped, tag = 'output window, operand 0']
    %7 = vsyncpa [#allocation5], 0
    %8 = vsyncpa [#allocation3], 0
    %s9 = scalar_lea.sflag [#allocation3], 1
    %10 = vsyncpa %s9, 0
    %11 = vsyncpa [#allocation4], 0
    %s12 = scalar_lea.sflag [#allocation4], 1
    %13 = vsyncpa %s12, 0
    loop: start=0, step=1, limit=6
    $region2: #{tpu_custom_call.1} parent=1 // loop_pre_header
      _
    $region3: #{tpu_custom_call.1} parent=1 // loop_header
      %s15 = sphi 0, %s19
      %p16 = scmp.ge.s32.totalorder %s15, 6
      %s22 = sphi 0, %s34
      %s23 = sphi 0, %s30
      %s24 = sphi 0, %s22
      %s25 = sphi 0, %s23
      %s26 = sphi 0, %s24
      %s27 = sphi 0, %s25
      %s35 = sphi 0, %s35
      %s37 = sphi 0, %s35
      %s38 = sphi 0, %s37
      %s52 = sphi 0, %s38
      %s60 = sphi 0, %s62
      %s63 = sphi 0, %s60
      %s64 = sphi 0, %s63
      %s80 = sphi 0, %s64
      %s88 = sphi 0, %s90
      %s91 = sphi 0, %s88
      %s92 = sphi 0, %s91
      %s108 = sphi 0, %s92
    $region4: #{tpu_custom_call.1} parent=1 // loop_header_branch
      %18 = sbr.rel (%p16) target = $region8
    $region5: #{tpu_custom_call.1} parent=1 // loop_body
      %s20 = ssub.s32 %s15, 1
      %s21 = ssub.s32 %s15, 2
      %s28 = sadd.s32 1, %s23
      %p29 = scmp.ge.s32.totalorder %s28, 1
      %s30 = scalar_select %p29, 0, %s28
      %s31 = sadd.s32 1, %s22
      %s32 = scalar_select %p29, %s31, %s22
      %p33 = scmp.ge.s32.totalorder %s32, 4
      %s34 = scalar_select %p33, 0, %s32
      %s36 = sadd.s32 %s35, 1
      %p39 = scmp.eq.s32.totalorder %s15, 3
      %p40 = scmp.ne.s32.totalorder %s35, %s37
      %p41 = scmp.eq.s32.totalorder %s15, 0
      %p42 = por %p40, %p41
      %p43 = scmp.ne.s32.totalorder %s35, %s37
      %p44 = scmp.eq.s32.totalorder %s20, 3
      %p45 = por %p43, %p44
      %p46 = scmp.ne.s32.totalorder %s37, %s38
      %p47 = scmp.eq.s32.totalorder %s20, 0
      %p48 = por %p46, %p47
      %p49 = scmp.ne.s32.totalorder %s37, %s38
      %p50 = scmp.eq.s32.totalorder %s21, 3
      %p51 = por %p49, %p50
      %p53 = scmp.ne.s32.totalorder %s38, %s52
      %p54 = scmp.eq.s32.totalorder %s21, 0
      %p55 = por %p53, %p54
      %s56 = ssub.s32 %s22, %s34
      %s57 = ssub.s32 %s23, %s30
      %s58 = sor.u32 %s56, %s57
      %p59 = scmp.eq.s32.totalorder %s58, 0
      %s61 = sadd.s32 %s60, 1
      %s62 = scalar_select %p59, %s60, %s61
      %p65 = pneg %p59
      %p66 = scmp.eq.s32.totalorder %s15, 3
      %p67 = por %p65, %p66
      %p68 = scmp.ne.s32.totalorder %s60, %s63
      %p69 = scmp.eq.s32.totalorder %s15, 0
      %p70 = por %p68, %p69
      %p71 = scmp.ne.s32.totalorder %s60, %s63
      %p72 = scmp.eq.s32.totalorder %s20, 3
      %p73 = por %p71, %p72
      %p74 = scmp.ne.s32.totalorder %s63, %s64
      %p75 = scmp.eq.s32.totalorder %s20, 0
      %p76 = por %p74, %p75
      %p77 = scmp.ne.s32.totalorder %s63, %s64
      %p78 = scmp.eq.s32.totalorder %s21, 3
      %p79 = por %p77, %p78
      %p81 = scmp.ne.s32.totalorder %s64, %s80
      %p82 = scmp.eq.s32.totalorder %s21, 0
      %p83 = por %p81, %p82
      %s84 = ssub.s32 %s22, %s34
      %s85 = ssub.s32 %s23, %s30
      %s86 = sor.u32 %s84, %s85
      %p87 = scmp.eq.s32.totalorder %s86, 0
      %s89 = sadd.s32 %s88, 1
      %s90 = scalar_select %p87, %s88, %s89
      %p93 = pneg %p87
      %p94 = scmp.eq.s32.totalorder %s15, 3
      %p95 = por %p93, %p94
      %p96 = scmp.ne.s32.totalorder %s88, %s91
      %p97 = scmp.eq.s32.totalorder %s15, 0
      %p98 = por %p96, %p97
      %p99 = scmp.ne.s32.totalorder %s88, %s91
      %p100 = scmp.eq.s32.totalorder %s20, 3
      %p101 = por %p99, %p100
      %p102 = scmp.ne.s32.totalorder %s91, %s92
      %p103 = scmp.eq.s32.totalorder %s20, 0
      %p104 = por %p102, %p103
      %p105 = scmp.ne.s32.totalorder %s91, %s92
      %p106 = scmp.eq.s32.totalorder %s21, 3
      %p107 = por %p105, %p106
      %p109 = scmp.ne.s32.totalorder %s92, %s108
      %p110 = scmp.eq.s32.totalorder %s21, 0
      %p111 = por %p109, %p110
      %p112 = scmp.le.s32.totalorder 1, %s15
      %p113 = scmp.lt.s32.totalorder %s15, 5
      %p114 = pnand %p112, %p113
      %p115 = pneg %p114
      // Predicated region
      $region9: #{tpu_custom_call.1} parent=5 // pred_check
        _
      $region10: #{tpu_custom_call.1} parent=5 // pred_check_branch
        %117 = sbr.rel (%p114) target = $region12
      $region11: #{tpu_custom_call.1} parent=5 // pred_region
        %s118 = ssub.s32 %s15, 1
        // Predicated region
        $region13: #{tpu_custom_call.1} parent=11 // pred_check
          %p119 = pneg %p48
        $region14: #{tpu_custom_call.1} parent=11 // pred_check_branch
          %121 = sbr.rel (%p119) target = $region16
        $region15: #{tpu_custom_call.1} parent=11 // pred_region
          %123 = vsyncadd [#allocation5], 0
          %s125 = sshll.u32 %s0, 4
          %s126 = int_to_ptr.hbm [resolvable:$true] %s125
          %128 = dma.hbm_to_smem %s126, 16, [#allocation2], [#allocation5]
        $region16: #{tpu_custom_call.1} parent=11 // pred_fallthru
          _
      $region12: #{tpu_custom_call.1} parent=5 // pred_fallthru
        _
      %p129 = scmp.lt.s32.totalorder %s15, 4
      // Predicated region
      $region17: #{tpu_custom_call.1} parent=5 // pred_check
        %p130 = pneg %p129
      $region18: #{tpu_custom_call.1} parent=5 // pred_check_branch
        %132 = sbr.rel (%p130) target = $region20
      $region19: #{tpu_custom_call.1} parent=5 // pred_region
        // Predicated region
        $region21: #{tpu_custom_call.1} parent=19 // pred_check
          %p133 = pneg %p70
        $region22: #{tpu_custom_call.1} parent=19 // pred_check_branch
          %135 = sbr.rel (%p133) target = $region24
        $region23: #{tpu_custom_call.1} parent=19 // pred_region
          %s136 = sand.u32 %s60, 1
          %s137 = scalar_lea.sflag [#allocation3], %s136
          %s138 = sand.u32 %s60, 1
          %s139 = smul.addr %s138, 256
          %s140 = scalar_lea.vmem [#allocation6], %s139
          %s141 = smul.u32 8, %s22
          %s142 = smul.u32 4, %s23
          %144 = vsyncadd %s137, 0
          %s145 = smul.addr %s141, 4
          %s146 = sadd.s32 %s142, %s145
          %s147 = smul.addr %s146, 8
          %s148 = scalar_lea.hbm %s1, %s147
          %s149 = sshll.u32 %s148, 4
          %s150 = int_to_ptr.hbm [resolvable:$true] %s149
          %s151 = sshll.u32 %s140, 4
          %s152 = int_to_ptr.vmem [resolvable:$true] %s151
          %157 = dma.hbm_to_vmem [thread:$0]  %s150, 4096, %s152, %s137, 512, 512, 32
        $region24: #{tpu_custom_call.1} parent=19 // pred_fallthru
          _
      $region20: #{tpu_custom_call.1} parent=5 // pred_fallthru
        _
      %p158 = scmp.le.s32.totalorder 1, %s15
      %p159 = scmp.lt.s32.totalorder %s15, 5
      %p160 = pnand %p158, %p159
      %p161 = pneg %p160
      // Predicated region
      $region25: #{tpu_custom_call.1} parent=5 // pred_check
        _
      $region26: #{tpu_custom_call.1} parent=5 // pred_check_branch
        %163 = sbr.rel (%p160) target = $region28
      $region27: #{tpu_custom_call.1} parent=5 // pred_region
        %s164 = ssub.s32 %s15, 1
        // Predicated region
        $region29: #{tpu_custom_call.1} parent=27 // pred_check
          %p165 = pneg %p48
        $region30: #{tpu_custom_call.1} parent=27 // pred_check_branch
          %167 = sbr.rel (%p165) target = $region32
        $region31: #{tpu_custom_call.1} parent=27 // pred_region
          %169 = dma.done [#allocation5], 16
        $region32: #{tpu_custom_call.1} parent=27 // pred_fallthru
          _
        %s170 = sand.u32 %s63, 1
        %s171 = scalar_lea.sflag [#allocation3], %s170
        %s172 = sand.u32 %s63, 1
        %s173 = smul.addr %s172, 256
        %s174 = scalar_lea.vmem [#allocation6], %s173
        // Predicated region
        $region33: #{tpu_custom_call.1} parent=27 // pred_check
          %p175 = pneg %p76
        $region34: #{tpu_custom_call.1} parent=27 // pred_check_branch
          %177 = sbr.rel (%p175) target = $region36
        $region35: #{tpu_custom_call.1} parent=27 // pred_region
          %179 = dma.done %s171, 4096
        $region36: #{tpu_custom_call.1} parent=27 // pred_fallthru
          _
        %180 = sfence
        %p181 = pneg %p48
        %p182 = pneg %p45
        %s183 = sand.u32 %s63, 1
        %s184 = scalar_lea.sflag [#allocation3], %s183
        %s185 = sand.u32 %s63, 1
        %s186 = smul.addr %s185, 256
        %s187 = scalar_lea.vmem [#allocation6], %s186
        %p188 = pneg %p76
        %p189 = pneg %p73
        %p190 = pneg %p104
        %p191 = pneg %p101
        %s192 = sand.u32 %s91, 1
        %s193 = scalar_lea.sflag [#allocation4], %s192
        %s194 = sand.u32 %s91, 1
        %s195 = smul.addr %s194, 256
        %s196 = scalar_lea.vmem [#allocation7], %s195
        %s197 = smul.u32 8, %s24
        %s198 = smul.u32 4, %s25
        %s199 = smul.u32 8, %s24
        %s200 = smul.u32 4, %s25
        %s201 = sld [smem:[#allocation2]]
        %s202 = sld [smem:[#allocation2 + $0x1]]
        %s203 = sld [smem:[#allocation2 + $0x2]]
        %s204 = sld [smem:[#allocation2 + $0x3]]
        %s205 = sld [smem:[#allocation2 + $0x4]]
        %s206 = sld [smem:[#allocation2 + $0x5]]
        %s207 = sld [smem:[#allocation2 + $0x6]]
        %v208 = vld [vmem:[%s174] sm:$0xff]
        %v209 = vld [vmem:[%s174 + $0x8] sm:$0xff]
        %v210 = vld [vmem:[%s174 + $0x10] sm:$0xff]
        %v211 = vld [vmem:[%s174 + $0x18] sm:$0xff]
        %v212 = vld [vmem:[%s174 + $0x20] sm:$0xff]
        %v213 = vld [vmem:[%s174 + $0x28] sm:$0xff]
        %v214 = vld [vmem:[%s174 + $0x30] sm:$0xff]
        %v215 = vld [vmem:[%s174 + $0x38] sm:$0xff]
        %v216 = vld [vmem:[%s174 + $0x40] sm:$0xff]
        %v217 = vld [vmem:[%s174 + $0x48] sm:$0xff]
        %v218 = vld [vmem:[%s174 + $0x50] sm:$0xff]
        %v219 = vld [vmem:[%s174 + $0x58] sm:$0xff]
        %v220 = vld [vmem:[%s174 + $0x60] sm:$0xff]
        %v221 = vld [vmem:[%s174 + $0x68] sm:$0xff]
        %v222 = vld [vmem:[%s174 + $0x70] sm:$0xff]
        %v223 = vld [vmem:[%s174 + $0x78] sm:$0xff]
        %v224 = vld [vmem:[%s174 + $0x80] sm:$0xff]
        %v225 = vld [vmem:[%s174 + $0x88] sm:$0xff]
        %v226 = vld [vmem:[%s174 + $0x90] sm:$0xff]
        %v227 = vld [vmem:[%s174 + $0x98] sm:$0xff]
        %v228 = vld [vmem:[%s174 + $0xa0] sm:$0xff]
        %v229 = vld [vmem:[%s174 + $0xa8] sm:$0xff]
        %v230 = vld [vmem:[%s174 + $0xb0] sm:$0xff]
        %v231 = vld [vmem:[%s174 + $0xb8] sm:$0xff]
        %v232 = vld [vmem:[%s174 + $0xc0] sm:$0xff]
        %v233 = vld [vmem:[%s174 + $0xc8] sm:$0xff]
        %v234 = vld [vmem:[%s174 + $0xd0] sm:$0xff]
        %v235 = vld [vmem:[%s174 + $0xd8] sm:$0xff]
        %v236 = vld [vmem:[%s174 + $0xe0] sm:$0xff]
        %v237 = vld [vmem:[%s174 + $0xe8] sm:$0xff]
        %v238 = vld [vmem:[%s174 + $0xf0] sm:$0xff]
        %v239 = vld [vmem:[%s174 + $0xf8] sm:$0xff]
        %v240 = vstv %s201
        %v241 = vmul.f32 %v240, %v208
        %v242 = vmul.f32 %v240, %v209
        %v243 = vmul.f32 %v240, %v210
        %v244 = vmul.f32 %v240, %v211
        %v245 = vmul.f32 %v240, %v212
        %v246 = vmul.f32 %v240, %v213
        %v247 = vmul.f32 %v240, %v214
        %v248 = vmul.f32 %v240, %v215
        %v249 = vmul.f32 %v240, %v216
        %v250 = vmul.f32 %v240, %v217
        %v251 = vmul.f32 %v240, %v218
        %v252 = vmul.f32 %v240, %v219
        %v253 = vmul.f32 %v240, %v220
        %v254 = vmul.f32 %v240, %v221
        %v255 = vmul.f32 %v240, %v222
        %v256 = vmul.f32 %v240, %v223
        %v257 = vmul.f32 %v240, %v224
        %v258 = vmul.f32 %v240, %v225
        %v259 = vmul.f32 %v240, %v226
        %v260 = vmul.f32 %v240, %v227
        %v261 = vmul.f32 %v240, %v228
        %v262 = vmul.f32 %v240, %v229
        %v263 = vmul.f32 %v240, %v230
        %v264 = vmul.f32 %v240, %v231
        %v265 = vmul.f32 %v240, %v232
        %v266 = vmul.f32 %v240, %v233
        %v267 = vmul.f32 %v240, %v234
        %v268 = vmul.f32 %v240, %v235
        %v269 = vmul.f32 %v240, %v236
        %v270 = vmul.f32 %v240, %v237
        %v271 = vmul.f32 %v240, %v238
        %v272 = vmul.f32 %v240, %v239
        %v273 = vstv %s202
        %v274 = vadd.f32 %v241, %v273
        %v275 = vadd.f32 %v242, %v273
        %v276 = vadd.f32 %v243, %v273
        %v277 = vadd.f32 %v244, %v273
        %v278 = vadd.f32 %v245, %v273
        %v279 = vadd.f32 %v246, %v273
        %v280 = vadd.f32 %v247, %v273
        %v281 = vadd.f32 %v248, %v273
        %v282 = vadd.f32 %v249, %v273
        %v283 = vadd.f32 %v250, %v273
        %v284 = vadd.f32 %v251, %v273
        %v285 = vadd.f32 %v252, %v273
        %v286 = vadd.f32 %v253, %v273
        %v287 = vadd.f32 %v254, %v273
        %v288 = vadd.f32 %v255, %v273
        %v289 = vadd.f32 %v256, %v273
        %v290 = vadd.f32 %v257, %v273
        %v291 = vadd.f32 %v258, %v273
        %v292 = vadd.f32 %v259, %v273
        %v293 = vadd.f32 %v260, %v273
        %v294 = vadd.f32 %v261, %v273
        %v295 = vadd.f32 %v262, %v273
        %v296 = vadd.f32 %v263, %v273
        %v297 = vadd.f32 %v264, %v273
        %v298 = vadd.f32 %v265, %v273
        %v299 = vadd.f32 %v266, %v273
        %v300 = vadd.f32 %v267, %v273
        %v301 = vadd.f32 %v268, %v273
        %v302 = vadd.f32 %v269, %v273
        %v303 = vadd.f32 %v270, %v273
        %v304 = vadd.f32 %v271, %v273
        %v305 = vadd.f32 %v272, %v273
        %v306 = vmax.f32 %v274, 0.0
        %v307 = vmax.f32 %v275, 0.0
        %v308 = vmax.f32 %v276, 0.0
        %v309 = vmax.f32 %v277, 0.0
        %v310 = vmax.f32 %v278, 0.0
        %v311 = vmax.f32 %v279, 0.0
        %v312 = vmax.f32 %v280, 0.0
        %v313 = vmax.f32 %v281, 0.0
        %v314 = vmax.f32 %v282, 0.0
        %v315 = vmax.f32 %v283, 0.0
        %v316 = vmax.f32 %v284, 0.0
        %v317 = vmax.f32 %v285, 0.0
        %v318 = vmax.f32 %v286, 0.0
        %v319 = vmax.f32 %v287, 0.0
        %v320 = vmax.f32 %v288, 0.0
        %v321 = vmax.f32 %v289, 0.0
        %v322 = vmax.f32 %v290, 0.0
        %v323 = vmax.f32 %v291, 0.0
        %v324 = vmax.f32 %v292, 0.0
        %v325 = vmax.f32 %v293, 0.0
        %v326 = vmax.f32 %v294, 0.0
        %v327 = vmax.f32 %v295, 0.0
        %v328 = vmax.f32 %v296, 0.0
        %v329 = vmax.f32 %v297, 0.0
        %v330 = vmax.f32 %v298, 0.0
        %v331 = vmax.f32 %v299, 0.0
        %v332 = vmax.f32 %v300, 0.0
        %v333 = vmax.f32 %v301, 0.0
        %v334 = vmax.f32 %v302, 0.0
        %v335 = vmax.f32 %v303, 0.0
        %v336 = vmax.f32 %v304, 0.0
        %v337 = vmax.f32 %v305, 0.0
        %v338 = vstv %s204
        %v339 = vmul.f32 %v338, %v208
        %v340 = vmul.f32 %v338, %v209
        %v341 = vmul.f32 %v338, %v210
        %v342 = vmul.f32 %v338, %v211
        %v343 = vmul.f32 %v338, %v212
        %v344 = vmul.f32 %v338, %v213
        %v345 = vmul.f32 %v338, %v214
        %v346 = vmul.f32 %v338, %v215
        %v347 = vmul.f32 %v338, %v216
        %v348 = vmul.f32 %v338, %v217
        %v349 = vmul.f32 %v338, %v218
        %v350 = vmul.f32 %v338, %v219
        %v351 = vmul.f32 %v338, %v220
        %v352 = vmul.f32 %v338, %v221
        %v353 = vmul.f32 %v338, %v222
        %v354 = vmul.f32 %v338, %v223
        %v355 = vmul.f32 %v338, %v224
        %v356 = vmul.f32 %v338, %v225
        %v357 = vmul.f32 %v338, %v226
        %v358 = vmul.f32 %v338, %v227
        %v359 = vmul.f32 %v338, %v228
        %v360 = vmul.f32 %v338, %v229
        %v361 = vmul.f32 %v338, %v230
        %v362 = vmul.f32 %v338, %v231
        %v363 = vmul.f32 %v338, %v232
        %v364 = vmul.f32 %v338, %v233
        %v365 = vmul.f32 %v338, %v234
        %v366 = vmul.f32 %v338, %v235
        %v367 = vmul.f32 %v338, %v236
        %v368 = vmul.f32 %v338, %v237
        %v369 = vmul.f32 %v338, %v238
        %v370 = vmul.f32 %v338, %v239
        %v371 = vstv %s205
        %v372 = vadd.f32 %v339, %v371
        %v373 = vadd.f32 %v340, %v371
        %v374 = vadd.f32 %v341, %v371
        %v375 = vadd.f32 %v342, %v371
        %v376 = vadd.f32 %v343, %v371
        %v377 = vadd.f32 %v344, %v371
        %v378 = vadd.f32 %v345, %v371
        %v379 = vadd.f32 %v346, %v371
        %v380 = vadd.f32 %v347, %v371
        %v381 = vadd.f32 %v348, %v371
        %v382 = vadd.f32 %v349, %v371
        %v383 = vadd.f32 %v350, %v371
        %v384 = vadd.f32 %v351, %v371
        %v385 = vadd.f32 %v352, %v371
        %v386 = vadd.f32 %v353, %v371
        %v387 = vadd.f32 %v354, %v371
        %v388 = vadd.f32 %v355, %v371
        %v389 = vadd.f32 %v356, %v371
        %v390 = vadd.f32 %v357, %v371
        %v391 = vadd.f32 %v358, %v371
        %v392 = vadd.f32 %v359, %v371
        %v393 = vadd.f32 %v360, %v371
        %v394 = vadd.f32 %v361, %v371
        %v395 = vadd.f32 %v362, %v371
        %v396 = vadd.f32 %v363, %v371
        %v397 = vadd.f32 %v364, %v371
        %v398 = vadd.f32 %v365, %v371
        %v399 = vadd.f32 %v366, %v371
        %v400 = vadd.f32 %v367, %v371
        %v401 = vadd.f32 %v368, %v371
        %v402 = vadd.f32 %v369, %v371
        %v403 = vadd.f32 %v370, %v371
        %v404 = vmax.f32 %v372, 0.0
        %v405 = vmax.f32 %v373, 0.0
        %v406 = vmax.f32 %v374, 0.0
        %v407 = vmax.f32 %v375, 0.0
        %v408 = vmax.f32 %v376, 0.0
        %v409 = vmax.f32 %v377, 0.0
        %v410 = vmax.f32 %v378, 0.0
        %v411 = vmax.f32 %v379, 0.0
        %v412 = vmax.f32 %v380, 0.0
        %v413 = vmax.f32 %v381, 0.0
        %v414 = vmax.f32 %v382, 0.0
        %v415 = vmax.f32 %v383, 0.0
        %v416 = vmax.f32 %v384, 0.0
        %v417 = vmax.f32 %v385, 0.0
        %v418 = vmax.f32 %v386, 0.0
        %v419 = vmax.f32 %v387, 0.0
        %v420 = vmax.f32 %v388, 0.0
        %v421 = vmax.f32 %v389, 0.0
        %v422 = vmax.f32 %v390, 0.0
        %v423 = vmax.f32 %v391, 0.0
        %v424 = vmax.f32 %v392, 0.0
        %v425 = vmax.f32 %v393, 0.0
        %v426 = vmax.f32 %v394, 0.0
        %v427 = vmax.f32 %v395, 0.0
        %v428 = vmax.f32 %v396, 0.0
        %v429 = vmax.f32 %v397, 0.0
        %v430 = vmax.f32 %v398, 0.0
        %v431 = vmax.f32 %v399, 0.0
        %v432 = vmax.f32 %v400, 0.0
        %v433 = vmax.f32 %v401, 0.0
        %v434 = vmax.f32 %v402, 0.0
        %v435 = vmax.f32 %v403, 0.0
        %v436 = vstv %s203
        %v437 = vmul.f32 %v436, %v306
        %v438 = vmul.f32 %v436, %v307
        %v439 = vmul.f32 %v436, %v308
        %v440 = vmul.f32 %v436, %v309
        %v441 = vmul.f32 %v436, %v310
        %v442 = vmul.f32 %v436, %v311
        %v443 = vmul.f32 %v436, %v312
        %v444 = vmul.f32 %v436, %v313
        %v445 = vmul.f32 %v436, %v314
        %v446 = vmul.f32 %v436, %v315
        %v447 = vmul.f32 %v436, %v316
        %v448 = vmul.f32 %v436, %v317
        %v449 = vmul.f32 %v436, %v318
        %v450 = vmul.f32 %v436, %v319
        %v451 = vmul.f32 %v436, %v320
        %v452 = vmul.f32 %v436, %v321
        %v453 = vmul.f32 %v436, %v322
        %v454 = vmul.f32 %v436, %v323
        %v455 = vmul.f32 %v436, %v324
        %v456 = vmul.f32 %v436, %v325
        %v457 = vmul.f32 %v436, %v326
        %v458 = vmul.f32 %v436, %v327
        %v459 = vmul.f32 %v436, %v328
        %v460 = vmul.f32 %v436, %v329
        %v461 = vmul.f32 %v436, %v330
        %v462 = vmul.f32 %v436, %v331
        %v463 = vmul.f32 %v436, %v332
        %v464 = vmul.f32 %v436, %v333
        %v465 = vmul.f32 %v436, %v334
        %v466 = vmul.f32 %v436, %v335
        %v467 = vmul.f32 %v436, %v336
        %v468 = vmul.f32 %v436, %v337
        %v469 = vstv %s206
        %v470 = vmul.f32 %v469, %v404
        %v471 = vmul.f32 %v469, %v405
        %v472 = vmul.f32 %v469, %v406
        %v473 = vmul.f32 %v469, %v407
        %v474 = vmul.f32 %v469, %v408
        %v475 = vmul.f32 %v469, %v409
        %v476 = vmul.f32 %v469, %v410
        %v477 = vmul.f32 %v469, %v411
        %v478 = vmul.f32 %v469, %v412
        %v479 = vmul.f32 %v469, %v413
        %v480 = vmul.f32 %v469, %v414
        %v481 = vmul.f32 %v469, %v415
        %v482 = vmul.f32 %v469, %v416
        %v483 = vmul.f32 %v469, %v417
        %v484 = vmul.f32 %v469, %v418
        %v485 = vmul.f32 %v469, %v419
        %v486 = vmul.f32 %v469, %v420
        %v487 = vmul.f32 %v469, %v421
        %v488 = vmul.f32 %v469, %v422
        %v489 = vmul.f32 %v469, %v423
        %v490 = vmul.f32 %v469, %v424
        %v491 = vmul.f32 %v469, %v425
        %v492 = vmul.f32 %v469, %v426
        %v493 = vmul.f32 %v469, %v427
        %v494 = vmul.f32 %v469, %v428
        %v495 = vmul.f32 %v469, %v429
        %v496 = vmul.f32 %v469, %v430
        %v497 = vmul.f32 %v469, %v431
        %v498 = vmul.f32 %v469, %v432
        %v499 = vmul.f32 %v469, %v433
        %v500 = vmul.f32 %v469, %v434
        %v501 = vmul.f32 %v469, %v435
        %v502 = vadd.f32 %v437, %v470
        %v503 = vadd.f32 %v438, %v471
        %v504 = vadd.f32 %v439, %v472
        %v505 = vadd.f32 %v440, %v473
        %v506 = vadd.f32 %v441, %v474
        %v507 = vadd.f32 %v442, %v475
        %v508 = vadd.f32 %v443, %v476
        %v509 = vadd.f32 %v444, %v477
        %v510 = vadd.f32 %v445, %v478
        %v511 = vadd.f32 %v446, %v479
        %v512 = vadd.f32 %v447, %v480
        %v513 = vadd.f32 %v448, %v481
        %v514 = vadd.f32 %v449, %v482
        %v515 = vadd.f32 %v450, %v483
        %v516 = vadd.f32 %v451, %v484
        %v517 = vadd.f32 %v452, %v485
        %v518 = vadd.f32 %v453, %v486
        %v519 = vadd.f32 %v454, %v487
        %v520 = vadd.f32 %v455, %v488
        %v521 = vadd.f32 %v456, %v489
        %v522 = vadd.f32 %v457, %v490
        %v523 = vadd.f32 %v458, %v491
        %v524 = vadd.f32 %v459, %v492
        %v525 = vadd.f32 %v460, %v493
        %v526 = vadd.f32 %v461, %v494
        %v527 = vadd.f32 %v462, %v495
        %v528 = vadd.f32 %v463, %v496
        %v529 = vadd.f32 %v464, %v497
        %v530 = vadd.f32 %v465, %v498
        %v531 = vadd.f32 %v466, %v499
        %v532 = vadd.f32 %v467, %v500
        %v533 = vadd.f32 %v468, %v501
        %v534 = vstv %s207
        %v535 = vadd.f32 %v502, %v534
        %v536 = vadd.f32 %v503, %v534
        %v537 = vadd.f32 %v504, %v534
        %v538 = vadd.f32 %v505, %v534
        %v539 = vadd.f32 %v506, %v534
        %v540 = vadd.f32 %v507, %v534
        %v541 = vadd.f32 %v508, %v534
        %v542 = vadd.f32 %v509, %v534
        %v543 = vadd.f32 %v510, %v534
        %v544 = vadd.f32 %v511, %v534
        %v545 = vadd.f32 %v512, %v534
        %v546 = vadd.f32 %v513, %v534
        %v547 = vadd.f32 %v514, %v534
        %v548 = vadd.f32 %v515, %v534
        %v549 = vadd.f32 %v516, %v534
        %v550 = vadd.f32 %v517, %v534
        %v551 = vadd.f32 %v518, %v534
        %v552 = vadd.f32 %v519, %v534
        %v553 = vadd.f32 %v520, %v534
        %v554 = vadd.f32 %v521, %v534
        %v555 = vadd.f32 %v522, %v534
        %v556 = vadd.f32 %v523, %v534
        %v557 = vadd.f32 %v524, %v534
        %v558 = vadd.f32 %v525, %v534
        %v559 = vadd.f32 %v526, %v534
        %v560 = vadd.f32 %v527, %v534
        %v561 = vadd.f32 %v528, %v534
        %v562 = vadd.f32 %v529, %v534
        %v563 = vadd.f32 %v530, %v534
        %v564 = vadd.f32 %v531, %v534
        %v565 = vadd.f32 %v532, %v534
        %v566 = vadd.f32 %v533, %v534
        %v567 = vmax.f32 %v535, 0.0
        %v568 = vmax.f32 %v536, 0.0
        %v569 = vmax.f32 %v537, 0.0
        %v570 = vmax.f32 %v538, 0.0
        %v571 = vmax.f32 %v539, 0.0
        %v572 = vmax.f32 %v540, 0.0
        %v573 = vmax.f32 %v541, 0.0
        %v574 = vmax.f32 %v542, 0.0
        %v575 = vmax.f32 %v543, 0.0
        %v576 = vmax.f32 %v544, 0.0
        %v577 = vmax.f32 %v545, 0.0
        %v578 = vmax.f32 %v546, 0.0
        %v579 = vmax.f32 %v547, 0.0
        %v580 = vmax.f32 %v548, 0.0
        %v581 = vmax.f32 %v549, 0.0
        %v582 = vmax.f32 %v550, 0.0
        %v583 = vmax.f32 %v551, 0.0
        %v584 = vmax.f32 %v552, 0.0
        %v585 = vmax.f32 %v553, 0.0
        %v586 = vmax.f32 %v554, 0.0
        %v587 = vmax.f32 %v555, 0.0
        %v588 = vmax.f32 %v556, 0.0
        %v589 = vmax.f32 %v557, 0.0
        %v590 = vmax.f32 %v558, 0.0
        %v591 = vmax.f32 %v559, 0.0
        %v592 = vmax.f32 %v560, 0.0
        %v593 = vmax.f32 %v561, 0.0
        %v594 = vmax.f32 %v562, 0.0
        %v595 = vmax.f32 %v563, 0.0
        %v596 = vmax.f32 %v564, 0.0
        %v597 = vmax.f32 %v565, 0.0
        %v598 = vmax.f32 %v566, 0.0
        %599 = vst [vmem:[%s196] sm:$0xff] %v567
        %600 = vst [vmem:[%s196 + $0x8] sm:$0xff] %v568
        %601 = vst [vmem:[%s196 + $0x10] sm:$0xff] %v569
        %602 = vst [vmem:[%s196 + $0x18] sm:$0xff] %v570
        %603 = vst [vmem:[%s196 + $0x20] sm:$0xff] %v571
        %604 = vst [vmem:[%s196 + $0x28] sm:$0xff] %v572
        %605 = vst [vmem:[%s196 + $0x30] sm:$0xff] %v573
        %606 = vst [vmem:[%s196 + $0x38] sm:$0xff] %v574
        %607 = vst [vmem:[%s196 + $0x40] sm:$0xff] %v575
        %608 = vst [vmem:[%s196 + $0x48] sm:$0xff] %v576
        %609 = vst [vmem:[%s196 + $0x50] sm:$0xff] %v577
        %610 = vst [vmem:[%s196 + $0x58] sm:$0xff] %v578
        %611 = vst [vmem:[%s196 + $0x60] sm:$0xff] %v579
        %612 = vst [vmem:[%s196 + $0x68] sm:$0xff] %v580
        %613 = vst [vmem:[%s196 + $0x70] sm:$0xff] %v581
        %614 = vst [vmem:[%s196 + $0x78] sm:$0xff] %v582
        %615 = vst [vmem:[%s196 + $0x80] sm:$0xff] %v583
        %616 = vst [vmem:[%s196 + $0x88] sm:$0xff] %v584
        %617 = vst [vmem:[%s196 + $0x90] sm:$0xff] %v585
        %618 = vst [vmem:[%s196 + $0x98] sm:$0xff] %v586
        %619 = vst [vmem:[%s196 + $0xa0] sm:$0xff] %v587
        %620 = vst [vmem:[%s196 + $0xa8] sm:$0xff] %v588
        %621 = vst [vmem:[%s196 + $0xb0] sm:$0xff] %v589
        %622 = vst [vmem:[%s196 + $0xb8] sm:$0xff] %v590
        %623 = vst [vmem:[%s196 + $0xc0] sm:$0xff] %v591
        %624 = vst [vmem:[%s196 + $0xc8] sm:$0xff] %v592
        %625 = vst [vmem:[%s196 + $0xd0] sm:$0xff] %v593
        %626 = vst [vmem:[%s196 + $0xd8] sm:$0xff] %v594
        %627 = vst [vmem:[%s196 + $0xe0] sm:$0xff] %v595
        %628 = vst [vmem:[%s196 + $0xe8] sm:$0xff] %v596
        %629 = vst [vmem:[%s196 + $0xf0] sm:$0xff] %v597
        %630 = vst [vmem:[%s196 + $0xf8] sm:$0xff] %v598
        %s631 = sand.u32 %s91, 1
        %s632 = scalar_lea.sflag [#allocation4], %s631
        %s633 = sand.u32 %s91, 1
        %s634 = smul.addr %s633, 256
        %s635 = scalar_lea.vmem [#allocation7], %s634
        // Predicated region
        $region37: #{tpu_custom_call.1} parent=27 // pred_check
          %p636 = pneg %p101
        $region38: #{tpu_custom_call.1} parent=27 // pred_check_branch
          %638 = sbr.rel (%p636) target = $region40
        $region39: #{tpu_custom_call.1} parent=27 // pred_region
          %s639 = smul.u32 8, %s24
          %s640 = smul.u32 4, %s25
          %642 = vsyncadd %s632, 0
          %s643 = smul.addr %s639, 4
          %s644 = sadd.s32 %s640, %s643
          %s645 = smul.addr %s644, 8
          %s646 = scalar_lea.hbm %s2, %s645
          %s647 = sshll.u32 %s635, 4
          %s648 = int_to_ptr.vmem [resolvable:$true] %s647
          %s649 = sshll.u32 %s646, 4
          %s650 = int_to_ptr.hbm [resolvable:$true] %s649
          %655 = dma.vmem_to_hbm [thread:$0]  %s648, 4096, %s650, %s632, 512, 512, 32
        $region40: #{tpu_custom_call.1} parent=27 // pred_fallthru
          _
      $region28: #{tpu_custom_call.1} parent=5 // pred_fallthru
        _
      %p656 = scmp.le.s32.totalorder 2, %s15
      // Predicated region
      $region41: #{tpu_custom_call.1} parent=5 // pred_check
        %p657 = pneg %p656
      $region42: #{tpu_custom_call.1} parent=5 // pred_check_branch
        %659 = sbr.rel (%p657) target = $region44
      $region43: #{tpu_custom_call.1} parent=5 // pred_region
        %s660 = ssub.s32 %s15, 2
        // Predicated region
        $region45: #{tpu_custom_call.1} parent=43 // pred_check
          %p661 = pneg %p107
        $region46: #{tpu_custom_call.1} parent=43 // pred_check_branch
          %663 = sbr.rel (%p661) target = $region48
        $region47: #{tpu_custom_call.1} parent=43 // pred_region
          %s664 = sand.u32 %s92, 1
          %s665 = scalar_lea.sflag [#allocation4], %s664
          %s666 = sand.u32 %s92, 1
          %s667 = smul.addr %s666, 256
          %s668 = scalar_lea.vmem [#allocation7], %s667
          %670 = dma.done %s665, 4096
        $region48: #{tpu_custom_call.1} parent=43 // pred_fallthru
          _
      $region44: #{tpu_custom_call.1} parent=5 // pred_fallthru
        _
    $region6: #{tpu_custom_call.1} parent=1 // loop_footer
      %s19 = sadd.s32 1, %s15
    $region7: #{tpu_custom_call.1} parent=1 // loop_footer_branch
      %14 = sbr.rel target = $region3
    $region8: #{tpu_custom_call.1} parent=1 // loop_exit
      _
    %671 = vsyncpa [#allocation3], 1
    %s672 = scalar_lea.sflag [#allocation3], 1
    %673 = vsyncpa %s672, 1
    %674 = vsyncpa [#allocation4], 1
    %s675 = scalar_lea.sflag [#allocation4], 1
    %676 = vsyncpa %s675, 1
    %677 = vsyncpa [#allocation5], 1
    %s678 = scalar_lea.sflag [#allocation5], 1
    %679 = vsyncpa %s678, 1

</llo_original>
